<compile_context>
chip_gen: v7x
topology: tpu7x:2x2x1
jax: 0.10.0
libtpu: 0.0.40
codegen_flags: <defaults>
</compile_context>

<pallas_src>
import jax
import jax.numpy as jnp
from jax.experimental import pallas as pl
from jax.experimental.pallas import tpu as pltpu


_LANE = 128
_SUBLANE = 8
_VMEM_TILE_BUDGET = 24 * 1024 * 1024   # per-TC budget for live tiles (double-buffered)
_VMEM_LIMIT_BYTES = 32 * 1024 * 1024   # explicit scoped-VMEM limit


def _round_up(x, m):
    return ((x + m - 1) // m) * m


def _pick_tile(dim_p, cap):
    """Largest multiple of 128 that divides dim_p (a 128-multiple) and is <= cap."""
    best = _LANE
    t = _LANE
    lim = min(cap, dim_p)
    while t <= lim:
        if dim_p % t == 0:
            best = t
        t += _LANE
    return best


def _fullk_kernel(x_ref, w_ref, b_ref, o_ref):
    # x_ref: (tm, K) input (any float dtype, cast to bf16 here)
    # w_ref: (K, tn)  bf16, pre-transposed weight tile
    # b_ref: (1, tn)  f32 bias tile
    # o_ref: (tm, tn) f32 output tile
    x = x_ref[...].astype(jnp.bfloat16)
    y = jnp.dot(x, w_ref[...], preferred_element_type=jnp.float32)
    o_ref[...] = jnp.maximum(y + b_ref[...], 0.0)


def _ktiled_kernel(x_ref, w_ref, b_ref, o_ref):
    # 3-D grid (i, j, k), K last.  o_ref (f32) keeps the same block index
    # across k, so it stays VMEM-resident and doubles as the accumulator.
    k = pl.program_id(2)

    @pl.when(k == 0)
    def _():
        o_ref[...] = jnp.zeros_like(o_ref)

    x = x_ref[...].astype(jnp.bfloat16)
    o_ref[...] += jnp.dot(x, w_ref[...], preferred_element_type=jnp.float32)

    @pl.when(k == pl.num_programs(2) - 1)
    def _():
        o_ref[...] = jnp.maximum(o_ref[...] + b_ref[...], 0.0)


def image_finetune(x, weight, bias, *, tm_cap=512, tn_cap=1024, tk_cap=2048):
    """relu(x @ weight.T + bias), matching nn.Linear semantics.

    x:      (batch, in_dim)
    weight: (out_dim, in_dim)  (PyTorch layout)
    bias:   (out_dim,)
    """
    batch, in_dim = x.shape
    out_dim = bias.shape[0]
    assert weight.shape == (out_dim, in_dim)

    # Pad feature dims only to the 128-lane granularity.
    in_dim_p = _round_up(in_dim, _LANE)
    out_dim_p = _round_up(out_dim, _LANE)

    # Pre-transposed, zero-padded bf16 weight (in_dim_p, out_dim_p): the pad
    # copy was needed anyway, so the transpose is free and the kernel gets a
    # canonical (tm,tk)x(tk,tn) MXU contraction.
    w_t = jnp.zeros((in_dim_p, out_dim_p), jnp.bfloat16)
    w_t = w_t.at[:in_dim, :out_dim].set(weight.T.astype(jnp.bfloat16))
    b_p = jnp.zeros((1, out_dim_p), jnp.float32)
    b_p = b_p.at[0, :out_dim].set(bias.astype(jnp.float32))

    # Batch tile: multiple of 8 sublanes, capped; batch padded only to tm.
    tm = _round_up(min(tm_cap, _round_up(batch, _SUBLANE)), _SUBLANE)
    batch_p = _round_up(batch, tm)

    # Pad x only if actually required; keep original dtype (bf16 cast in-kernel).
    if (batch_p, in_dim_p) != (batch, in_dim):
        x_p = jnp.zeros((batch_p, in_dim_p), x.dtype)
        x_p = x_p.at[:batch, :in_dim].set(x)
    else:
        x_p = x

    x_bytes = jnp.dtype(x.dtype).itemsize
    tn = _pick_tile(out_dim_p, tn_cap)

    # Megacore: if there is only one batch tile, prefer >=2 N tiles so both
    # TensorCores (v7x) get work.
    if batch_p // tm == 1 and out_dim_p // tn < 2 and out_dim_p >= 2 * _LANE:
        tn = _pick_tile(out_dim_p, out_dim_p // 2)

    def _footprint(tk):
        # Double-buffered input tiles + double-buffered output tile.
        return (2 * tm * tk * x_bytes          # x tile
                + 2 * tk * tn * 2              # W tile (bf16)
                + 2 * tn * 4                   # bias tile
                + 2 * tm * tn * 4)             # output tile (f32)

    full_k_fits = _footprint(in_dim_p) <= _VMEM_TILE_BUDGET

    n_i = batch_p // tm
    n_j = out_dim_p // tn
    cost = pl.CostEstimate(
        flops=2 * batch_p * in_dim_p * out_dim_p,
        transcendentals=0,
        bytes_accessed=(batch_p * in_dim_p * x_bytes * n_j     # x re-streamed per j
                        + in_dim_p * out_dim_p * 2 * n_i        # W re-streamed per i
                        + out_dim_p * 4 * n_i                   # bias re-streamed per i
                        + batch_p * out_dim_p * 4),             # output writeback
    )
    compiler_params_2d = pltpu.CompilerParams(
        dimension_semantics=("parallel", "parallel"),
        vmem_limit_bytes=_VMEM_LIMIT_BYTES)
    compiler_params_3d = pltpu.CompilerParams(
        dimension_semantics=("parallel", "parallel", "arbitrary"),
        vmem_limit_bytes=_VMEM_LIMIT_BYTES)

    if full_k_fits:
        # Common case: single full-K block per (i, j) -> one matmul, no
        # accumulator, no per-K re-DMA, minimal grid-step overhead.
        out_p = pl.pallas_call(
            _fullk_kernel,
            out_shape=jax.ShapeDtypeStruct((batch_p, out_dim_p), jnp.float32),
            grid_spec=pltpu.PrefetchScalarGridSpec(
                num_scalar_prefetch=0,
                grid=(n_i, n_j),
                in_specs=[
                    pl.BlockSpec((tm, in_dim_p), lambda i, j: (i, 0)),   # x
                    pl.BlockSpec((in_dim_p, tn), lambda i, j: (0, j)),   # W^T
                    pl.BlockSpec((1, tn), lambda i, j: (0, j)),          # bias
                ],
                out_specs=pl.BlockSpec((tm, tn), lambda i, j: (i, j)),
            ),
            compiler_params=compiler_params_2d,
            cost_estimate=cost,
        )(x_p, w_t, b_p)
    else:
        # Huge in_dim fallback: K-tiled reduction, accumulate directly into
        # the resident f32 output block (no scratch).
        tk = _pick_tile(in_dim_p, tk_cap)
        while _footprint(tk) > _VMEM_TILE_BUDGET and tk > _LANE:
            tk = _pick_tile(in_dim_p, tk - _LANE)
        out_p = pl.pallas_call(
            _ktiled_kernel,
            out_shape=jax.ShapeDtypeStruct((batch_p, out_dim_p), jnp.float32),
            grid_spec=pltpu.PrefetchScalarGridSpec(
                num_scalar_prefetch=0,
                grid=(n_i, n_j, in_dim_p // tk),
                in_specs=[
                    pl.BlockSpec((tm, tk), lambda i, j, k: (i, k)),      # x
                    pl.BlockSpec((tk, tn), lambda i, j, k: (k, j)),      # W^T
                    pl.BlockSpec((1, tn), lambda i, j, k: (0, j)),       # bias
                ],
                out_specs=pl.BlockSpec((tm, tn), lambda i, j, k: (i, j)),
            ),
            compiler_params=compiler_params_3d,
            cost_estimate=cost,
        )(x_p, w_t, b_p)

    return out_p[:batch, :out_dim].astype(x.dtype)


if __name__ == "__main__":
    # Small, deterministic synthetic parameters (no checkpoint files).
    # TODO(synk): weights/bias come from pickle files in the original module;
    # here they are synthesized deterministically instead.
    batch, in_dim, out_dim = 8, 32, 16

    key = jax.random.PRNGKey(0)
    kx, kw, kb = jax.random.split(key, 3)
    x = jax.random.normal(kx, (batch, in_dim), dtype=jnp.float32)
    weight = jax.random.normal(kw, (out_dim, in_dim), dtype=jnp.float32) * 0.1
    bias = jax.random.normal(kb, (out_dim,), dtype=jnp.float32) * 0.1

    out = image_finetune(x, weight, bias)
    out = jax.block_until_ready(out)

    # Pure-JAX f32 reference of Linear + ReLU semantics.
    ref = jnp.maximum(x @ weight.T + bias, 0.0)
    assert out.shape == (batch, out_dim)
    # bf16 MXU operands (f32 accumulation) -> loosened tolerance vs f32 ref.
    assert jnp.allclose(out, ref, atol=3e-2, rtol=3e-2), "mismatch vs reference"

    print("KERNEL_OK")
</pallas_src>

<mosaic_0001>
module attributes {stable_mosaic.version = 11 : i64} {
  func.func @_fullk_kernel(%arg0: i32, %arg1: i32, %arg2: memref<8x128xf32, #tpu.memory_space<vmem>>, %arg3: memref<128x128xbf16, #tpu.memory_space<vmem>>, %arg4: memref<1x128xf32, #tpu.memory_space<vmem>>, %arg5: memref<8x128xf32, #tpu.memory_space<vmem>>) attributes {dimension_semantics = [#tpu.dimension_semantics<parallel>, #tpu.dimension_semantics<parallel>], iteration_bounds = array<i64: 1, 1>, scalar_prefetch = 0 : i64, scratch_operands = 0 : i64, tpu.core_type = #tpu.core_type<tc>, window_params = [{transform_indices = @transform_0, window_bounds = array<i64: 8, 128>}, {transform_indices = @transform_1, window_bounds = array<i64: 128, 128>}, {transform_indices = @transform_2, window_bounds = array<i64: 1, 128>}, {transform_indices = @transform_3, window_bounds = array<i64: 8, 128>}]} {
    %c0 = arith.constant 0 : index
    %c0_0 = arith.constant 0 : index
    %0 = vector.load %arg2[%c0, %c0_0] : memref<8x128xf32, #tpu.memory_space<vmem>>, vector<8x128xf32>
    %1 = arith.truncf %0 : vector<8x128xf32> to vector<8x128xbf16>
    %c0_1 = arith.constant 0 : index
    %c0_2 = arith.constant 0 : index
    %2 = vector.load %arg3[%c0_1, %c0_2] : memref<128x128xbf16, #tpu.memory_space<vmem>>, vector<128x128xbf16>
    %cst = arith.constant dense<0.000000e+00> : vector<8x128xf32>
    %3 = tpu.matmul %1, %2, %cst {dimension_numbers = #tpu.dot_dimension_numbers<[1], [0], [0], [1], [0, 0, 1, 1], [], []>} : vector<8x128xbf16>, vector<128x128xbf16>, vector<8x128xf32> -> vector<8x128xf32>
    %c0_3 = arith.constant 0 : index
    %c0_4 = arith.constant 0 : index
    %4 = vector.load %arg4[%c0_3, %c0_4] : memref<1x128xf32, #tpu.memory_space<vmem>>, vector<1x128xf32>
    %5 = vector.broadcast %4 : vector<1x128xf32> to vector<8x128xf32>
    %6 = arith.addf %3, %5 : vector<8x128xf32>
    %cst_5 = arith.constant 0.000000e+00 : f32
    %7 = vector.broadcast %cst_5 : f32 to vector<8x128xf32>
    %8 = arith.maximumf %6, %7 : vector<8x128xf32>
    %c0_6 = arith.constant 0 : index
    %c0_7 = arith.constant 0 : index
    %9 = vector.load %arg5[%c0_6, %c0_7] : memref<8x128xf32, #tpu.memory_space<vmem>>, vector<8x128xf32>
    tpu.vector_store %arg5[%c0_6, %c0_7], %8 {strides = array<i32>} : memref<8x128xf32, #tpu.memory_space<vmem>>, vector<8x128xf32>,
    return
  }
  func.func @transform_0(%arg0: i32, %arg1: i32) -> (i32, i32) {
    %c0_i32 = arith.constant 0 : i32
    %c0_i32_0 = arith.constant 0 : i32
    return %arg0, %c0_i32 : i32, i32
  }
  func.func @transform_1(%arg0: i32, %arg1: i32) -> (i32, i32) {
    %c0_i32 = arith.constant 0 : i32
    %c0_i32_0 = arith.constant 0 : i32
    return %c0_i32, %arg1 : i32, i32
  }
  func.func @transform_2(%arg0: i32, %arg1: i32) -> (i32, i32) {
    %c0_i32 = arith.constant 0 : i32
    %c0_i32_0 = arith.constant 0 : i32
    return %c0_i32, %arg1 : i32, i32
  }
  func.func @transform_3(%arg0: i32, %arg1: i32) -> (i32, i32) {
    %c0_i32 = arith.constant 0 : i32
    return %arg0, %arg1 : i32, i32
  }
}

</mosaic_0001>

<llo_original>
// kernel: tpu_custom_call.1
$region0: #{tpu_custom_call.1}
  #allocation0 [shape = 'u32[]', space=smem, size = 0x4, offset = 0x4, fixed_abs, tag = 'smem constant byte address 0x4 - core index']
  #allocation1 [shape = 'u32[144,128]{1,0:T(1,128)}', space=vmem, size = 0x12000, scoped, tag = 'internal scratch']
  %s0 = inlined_call_operand.hbm [shape: f32[8,128], index: 0, kind: input, shape index: {}]
  %s1 = inlined_call_operand.hbm [shape: bf16[128,128], index: 1, kind: input, shape index: {}]
  %s2 = inlined_call_operand.vmem [shape: f32[1,128], index: 2, kind: input, shape index: {}]
  %s3 = inlined_call_operand.hbm [shape: f32[8,128], index: 3, kind: output, shape index: {}]
  %s4 = sld [smem:[#allocation0]]
  $region30: #{tpu_custom_call.1} parent=0
    _
  %s6 = ssub.s32 1, %s4
  %s7 = scalar_select 0, %s6, %s4
  $region1: #{tpu_custom_call.1} parent=0
    #allocation2 [shape = 'u8[4096]{0}', space=vmem, size = 0x1000, scoped, tag = 'input window, operand 0, single buffered']
    #allocation3 [shape = 's32[1]{0}', space=sflag, size = 0x4, scoped, tag = 'scoped memory for tpu_custom_call.1']
    #allocation4 [shape = 's32[1]{0}', space=sflag, size = 0x4, scoped, tag = 'scoped memory for tpu_custom_call.1']
    #allocation5 [shape = 'u8[32768]{0}', space=vmem, size = 0x8000, scoped, tag = 'input window, operand 1, single buffered']
    #allocation6 [shape = 's32[1]{0}', space=sflag, size = 0x4, scoped, tag = 'scoped memory for tpu_custom_call.1']
    #allocation7 [shape = 'u8[4096]{0}', space=vmem, size = 0x1000, scoped, tag = 'output window, operand 0, single buffered']
    %8 = vsyncpa [#allocation3], 0
    %9 = vsyncpa [#allocation6], 0
    %10 = vsyncpa [#allocation4], 0
    // Predicated region
    $region2: #{tpu_custom_call.1} parent=1 // pred_check
      _
    $region3: #{tpu_custom_call.1} parent=1 // pred_check_branch
      %12 = sbr.rel (0) target = $region5
    $region4: #{tpu_custom_call.1} parent=1 // pred_region
      %s14 = ssub.s32 128, 128
      %15 = vsyncadd [#allocation3], %s14
      %s17 = sshll.u32 [#allocation2], 4
      %s18 = int_to_ptr.vmem [resolvable:$true] %s17
      %20 = dma.hbm_to_vmem [thread:$0]  %s0, 128, %s18, [#allocation3]
    $region5: #{tpu_custom_call.1} parent=1 // pred_fallthru
      _
    // Predicated region
    $region6: #{tpu_custom_call.1} parent=1 // pred_check
      _
    $region7: #{tpu_custom_call.1} parent=1 // pred_check_branch
      %22 = sbr.rel (0) target = $region9
    $region8: #{tpu_custom_call.1} parent=1 // pred_region
      %s24 = ssub.s32 1024, 1024
      %25 = vsyncadd [#allocation6], %s24
      %s26 = sshll.u32 [#allocation5], 4
      %s27 = int_to_ptr.vmem [resolvable:$true] %s26
      %32 = dma.hbm_to_vmem [thread:$0]  %s1, 1024, %s27, [#allocation6], 64, 64, 4
    $region9: #{tpu_custom_call.1} parent=1 // pred_fallthru
      _
    // Predicated region
    $region10: #{tpu_custom_call.1} parent=1 // pred_check
      _
    $region11: #{tpu_custom_call.1} parent=1 // pred_check_branch
      %34 = sbr.rel (0) target = $region13
    $region12: #{tpu_custom_call.1} parent=1 // pred_region
      _
    $region13: #{tpu_custom_call.1} parent=1 // pred_fallthru
      _
    // Predicated region
    $region14: #{tpu_custom_call.1} parent=1 // pred_check
      _
    $region15: #{tpu_custom_call.1} parent=1 // pred_check_branch
      %36 = sbr.rel (0) target = $region17
    $region16: #{tpu_custom_call.1} parent=1 // pred_region
      %37 = dma.done [#allocation3], 128
    $region17: #{tpu_custom_call.1} parent=1 // pred_fallthru
      _
    // Predicated region
    $region18: #{tpu_custom_call.1} parent=1 // pred_check
      _
    $region19: #{tpu_custom_call.1} parent=1 // pred_check_branch
      %39 = sbr.rel (0) target = $region21
    $region20: #{tpu_custom_call.1} parent=1 // pred_region
      %40 = dma.done [#allocation6], 1024
    $region21: #{tpu_custom_call.1} parent=1 // pred_fallthru
      _
    %v42 = vld [vmem:[#allocation2] sm:$0xff]
    %v43 = vpack.c.bf16 %v42, %v42
    %v44 = vld [vmem:[#allocation5] sm:$0xf]
    %v45 = vld [vmem:[#allocation5 + $0x4] sm:$0xf]
    %v46 = vld [vmem:[#allocation5 + $0x8] sm:$0xf]
    %v47 = vld [vmem:[#allocation5 + $0xc] sm:$0xf]
    %v48 = vld [vmem:[#allocation5 + $0x10] sm:$0xf]
    %v49 = vld [vmem:[#allocation5 + $0x14] sm:$0xf]
    %v50 = vld [vmem:[#allocation5 + $0x18] sm:$0xf]
    %v51 = vld [vmem:[#allocation5 + $0x1c] sm:$0xf]
    %v52 = vld [vmem:[#allocation5 + $0x20] sm:$0xf]
    %v53 = vld [vmem:[#allocation5 + $0x24] sm:$0xf]
    %v54 = vld [vmem:[#allocation5 + $0x28] sm:$0xf]
    %v55 = vld [vmem:[#allocation5 + $0x2c] sm:$0xf]
    %v56 = vld [vmem:[#allocation5 + $0x30] sm:$0xf]
    %v57 = vld [vmem:[#allocation5 + $0x34] sm:$0xf]
    %v58 = vld [vmem:[#allocation5 + $0x38] sm:$0xf]
    %v59 = vld [vmem:[#allocation5 + $0x3c] sm:$0xf]
    %v60 = vld [vmem:[%s2] sm:$0x1]
    %v62 = vlaneseq
    %v63 = vshrl.u32 %v62, 7
    %v64 = vsub.s32 0, %v63
    %v65 = vrot.slane %v60, %v64
    %v83 = vunpack.c.l.b16 %v44
    %v84 = vunpack.c.l.b16 %v45
    %v85 = vunpack.c.l.b16 %v46
    %v86 = vunpack.c.l.b16 %v47
    %v87 = vunpack.c.l.b16 %v48
    %v88 = vunpack.c.l.b16 %v49
    %v89 = vunpack.c.l.b16 %v50
    %v90 = vunpack.c.l.b16 %v51
    %v91 = vunpack.c.l.b16 %v52
    %v92 = vunpack.c.l.b16 %v53
    %v93 = vunpack.c.l.b16 %v54
    %v94 = vunpack.c.l.b16 %v55
    %v95 = vunpack.c.l.b16 %v56
    %v96 = vunpack.c.l.b16 %v57
    %v97 = vunpack.c.l.b16 %v58
    %v98 = vunpack.c.l.b16 %v59
    %v99 = vpack.c.b16 %v84, %v83
    %v100 = vpack.c.b16 %v86, %v85
    %v101 = vpack.c.b16 %v88, %v87
    %v102 = vpack.c.b16 %v90, %v89
    %v103 = vpack.c.b16 %v92, %v91
    %v104 = vpack.c.b16 %v94, %v93
    %v105 = vpack.c.b16 %v96, %v95
    %v106 = vpack.c.b16 %v98, %v97
    %115 = vmatprep.subr.bf16.mxu0 0
    %116 = vmatpush1.bf16.msra.mxu0 %v99
    %117 = vmatprep.subr.bf16.mxu0 0
    %118 = vmatpush1.bf16.msra.mxu0 %v100
    %119 = vmatprep.subr.bf16.mxu0 0
    %120 = vmatpush1.bf16.msra.mxu0 %v101
    %121 = vmatprep.subr.bf16.mxu0 0
    %122 = vmatpush1.bf16.msra.mxu0 %v102
    %123 = vmatprep.subr.bf16.mxu0 0
    %124 = vmatpush1.bf16.msra.mxu0 %v103
    %125 = vmatprep.subr.bf16.mxu0 0
    %126 = vmatpush1.bf16.msra.mxu0 %v104
    %127 = vmatprep.subr.bf16.mxu0 0
    %128 = vmatpush1.bf16.msra.mxu0 %v105
    %129 = vmatprep.subr.bf16.mxu0 0
    %130 = vmatpush1.bf16.msra.mxu0 %v106
    %131 = vmatprep.subr.bf16.mxu0 0
    %132 = vmatpush1.bf16.msra.mxu0 0
    %133 = vmatprep.subr.bf16.mxu0 0
    %134 = vmatpush1.bf16.msra.mxu0 0
    %135 = vmatprep.subr.bf16.mxu0 0
    %136 = vmatpush1.bf16.msra.mxu0 0
    %137 = vmatprep.subr.bf16.mxu0 0
    %138 = vmatpush1.bf16.msra.mxu0 0
    %139 = vmatprep.subr.bf16.mxu0 0
    %140 = vmatpush1.bf16.msra.mxu0 0
    %141 = vmatprep.subr.bf16.mxu0 0
    %142 = vmatpush1.bf16.msra.mxu0 0
    %143 = vmatprep.subr.bf16.mxu0 0
    %144 = vmatpush1.bf16.msra.mxu0 0
    %145 = vmatprep.subr.bf16.mxu0 0
    %146 = vmatpush1.bf16.msra.mxu0 0
    %147 = vmatprep.mubr.bf16.mxu0 0
    %148 = vmatmul.mubr.bf16.gmra.mrb[0].mxu0 %v43
    %v149 = vpop.f32.mrb[0].mxu0
    %v150 = vadd.f32 %v65, %v149
    %v151 = vpop.f32.mrb[0].mxu0
    %v152 = vpop.f32.mrb[0].mxu0
    %v153 = vpop.f32.mrb[0].mxu0
    %154 = vdwg.mxu0
    %v155 = vmax.f32 %v150, 0.0
    %156 = vst [vmem:[#allocation7] sm:$0xff] %v155
    // Predicated region
    $region22: #{tpu_custom_call.1} parent=1 // pred_check
      _
    $region23: #{tpu_custom_call.1} parent=1 // pred_check_branch
      %158 = sbr.rel (0) target = $region25
    $region24: #{tpu_custom_call.1} parent=1 // pred_region
      %s160 = ssub.s32 128, 128
      %161 = vsyncadd [#allocation4], %s160
      %s163 = sshll.u32 [#allocation7], 4
      %s164 = int_to_ptr.vmem [resolvable:$true] %s163
      %166 = dma.vmem_to_hbm [thread:$0]  %s164, 128, %s3, [#allocation4]
    $region25: #{tpu_custom_call.1} parent=1 // pred_fallthru
      _
    // Predicated region
    $region26: #{tpu_custom_call.1} parent=1 // pred_check
      _
    $region27: #{tpu_custom_call.1} parent=1 // pred_check_branch
      %168 = sbr.rel (0) target = $region29
    $region28: #{tpu_custom_call.1} parent=1 // pred_region
      %169 = dma.done [#allocation4], 128
    $region29: #{tpu_custom_call.1} parent=1 // pred_fallthru
      _
    %170 = vsyncpa [#allocation3], 1
    %171 = vsyncpa [#allocation6], 1
    %172 = vsyncpa [#allocation4], 1

</llo_original>
